<compile_context>
chip_gen: v7x
topology: tpu7x:2x2x1
jax: 0.10.0
libtpu: 0.0.40
codegen_flags: <defaults>
</compile_context>

<pallas_src>
import functools
import math

import jax
import jax.numpy as jnp
from jax.experimental import pallas as pl
from jax.experimental.pallas import tpu as pltpu


_LN_EPS = 1e-5


# ---------------------------------------------------------------------------
# Pallas kernel: fused conv-as-matmul (spatial-last / lane-dense orientation)
#
#   acc = W2 (Cout, K) @ patches (K, M)        (bf16 x bf16 -> f32 on the MXU)
#   if residual:  acc = r + acc   or   acc = r - acc        (sign = +1 / -1)
#   if layernorm: acc = (acc - mean) * rsqrt(var + eps) [ * gamma + beta ]
#
# One grid step == one batch sample, so the LayerNorm reduction over (C,H,W)
# is a full-block reduction inside the kernel.
# ---------------------------------------------------------------------------
def _make_conv_kernel(sign, has_residual, do_ln, has_affine):
    def kernel(*refs):
        w_ref, x_ref = refs[0], refs[1]
        i = 2
        r_ref = g_ref = b_ref = None
        if has_residual:
            r_ref = refs[i]; i += 1
        if has_affine:
            g_ref, b_ref = refs[i], refs[i + 1]; i += 2
        o_ref = refs[i]

        acc = jnp.dot(w_ref[...], x_ref[...],
                      preferred_element_type=jnp.float32)
        if has_residual:
            acc = (r_ref[...] + acc) if sign > 0 else (r_ref[...] - acc)
        if do_ln:
            inv_n = 1.0 / float(acc.shape[0] * acc.shape[1])
            mu = jnp.sum(acc) * inv_n
            d = acc - mu
            var = jnp.sum(d * d) * inv_n
            acc = d * jax.lax.rsqrt(var + _LN_EPS)
            if has_affine:
                acc = acc * g_ref[...] + b_ref[...]
        o_ref[...] = acc.astype(o_ref.dtype)

    return kernel


def _conv_matmul(w2, patches, residual=None, sign=1.0, ln=False,
                 gamma=None, beta=None):
    """w2: (Cout, K); patches: (N, K, M); residual: (N, Cout, M) f32 or None.
    Returns (N, Cout, M) f32 = residual (+/-) (w2 @ patches), optionally
    LayerNorm-ed per sample (optional affine gamma/beta of shape (Cout, M))."""
    N, K, M = patches.shape
    Cout, Kw = w2.shape
    assert K == Kw, (K, Kw)
    has_res = residual is not None
    has_aff = gamma is not None

    inputs = [w2.astype(jnp.bfloat16), patches.astype(jnp.bfloat16)]
    in_specs = [
        pl.BlockSpec((Cout, K), lambda n: (0, 0)),
        pl.BlockSpec((None, K, M), lambda n: (n, 0, 0)),
    ]
    if has_res:
        inputs.append(residual.astype(jnp.float32))
        in_specs.append(pl.BlockSpec((None, Cout, M), lambda n: (n, 0, 0)))
    if has_aff:
        inputs += [gamma.astype(jnp.float32), beta.astype(jnp.float32)]
        in_specs += [pl.BlockSpec((Cout, M), lambda n: (0, 0)),
                     pl.BlockSpec((Cout, M), lambda n: (0, 0))]

    kernel = _make_conv_kernel(float(sign), has_res, bool(ln), has_aff)
    return pl.pallas_call(
        kernel,
        out_shape=jax.ShapeDtypeStruct((N, Cout, M), jnp.float32),
        grid_spec=pltpu.PrefetchScalarGridSpec(
            num_scalar_prefetch=0,
            grid=(N,),                      # one grid step per batch sample
            in_specs=in_specs,
            out_specs=pl.BlockSpec((None, Cout, M), lambda n: (n, 0, 0)),
        ),
        compiler_params=pltpu.CompilerParams(
            dimension_semantics=("parallel",)),   # both TCs on v7x
    )(*inputs)


# ---------------------------------------------------------------------------
# Conv glue (im2col stays in XLA; all contraction + epilogue runs in Pallas)
# ---------------------------------------------------------------------------
def conv2d(x, w2, k, stride=1, pad=0, pad_mode="constant",
           residual=None, sign=1.0, ln=False, gamma=None, beta=None):
    """NCHW conv as im2col + fused Pallas matmul.
    x: (N, C, H, W) f32.  w2: (Cout, k*k*C) flattened with
    w2[co, (dy*k+dx)*C + ci] == torch_weight[co, ci, dy, dx].
    Returns residual + sign*conv(x) (optionally LayerNorm-ed): (N,Cout,Ho,Wo)."""
    N, C, H, W = x.shape
    Cout = w2.shape[0]
    xb = x.astype(jnp.bfloat16)            # bf16 MXU inputs; epilogue is f32
    if pad > 0:
        xb = jnp.pad(xb, ((0, 0), (0, 0), (pad, pad), (pad, pad)),
                     mode=pad_mode)
    Hp, Wp = xb.shape[2], xb.shape[3]
    Ho = (Hp - k) // stride + 1
    Wo = (Wp - k) // stride + 1
    taps = [xb[:, :, dy:dy + stride * (Ho - 1) + 1:stride,
               dx:dx + stride * (Wo - 1) + 1:stride]
            for dy in range(k) for dx in range(k)]
    patches = jnp.stack(taps, axis=1).reshape(N, k * k * C, Ho * Wo)
    res = None if residual is None else residual.reshape(N, Cout, Ho * Wo)
    g = None if gamma is None else gamma.reshape(Cout, Ho * Wo)
    b = None if beta is None else beta.reshape(Cout, Ho * Wo)
    out = _conv_matmul(w2, patches, residual=res, sign=sign, ln=ln,
                       gamma=g, beta=b)
    return out.reshape(N, Cout, Ho, Wo)


def conv_transpose_s2(x, w2, k, residual=None, ln=False, gamma=None, beta=None):
    """ConvTranspose2d(stride=2, padding=0, bias=False) as
    zero-dilation + pad(k-1) + direct kxk conv, with the residual add and
    the per-sample LayerNorm fused into the conv kernel's epilogue."""
    N, C, H, W = x.shape
    xd = jnp.zeros((N, C, 2 * H - 1, 2 * W - 1), x.dtype)
    xd = xd.at[:, :, ::2, ::2].set(x)
    return conv2d(xd, w2, k=k, stride=1, pad=k - 1, pad_mode="constant",
                  residual=residual, sign=1.0, ln=ln, gamma=gamma, beta=beta)


# ---------------------------------------------------------------------------
# MgConv_helm2 forward
# ---------------------------------------------------------------------------
def _mgite(u, f, w_a, w_s):
    """u <- u + S(f - A(u));  A, S are 3x3 stride-1 reflect-pad convs."""
    r = conv2d(u, w_a, k=3, stride=1, pad=1, pad_mode="reflect",
               residual=f, sign=-1.0)                      # f - A(u)
    return conv2d(r, w_s, k=3, stride=1, pad=1, pad_mode="reflect",
                  residual=u, sign=1.0)                    # u + S(.)


def mgconv_helm2_forward(params, f, num_iteration):
    L = len(num_iteration)
    levels = params["levels"]
    out_list = [None] * L

    # ---- downward sweep: layer_l = [Restrict (l>0)] + pre-smoothing MgIte's
    u, cur_f = None, f
    for l in range(L):
        lvl = levels[l]
        if l > 0:
            cur_f = conv2d(cur_f, lvl["R"], k=3, stride=2, pad=0)   # f <- R(f)
            u = conv2d(u, lvl["Pi"], k=3, stride=2, pad=0)          # u <- Pi(u)
        for i in range(num_iteration[l][0]):
            if l == 0 and i == 0:
                u = conv2d(cur_f, lvl["S"][0], k=3, stride=1, pad=1,
                           pad_mode="reflect")                      # MgIte_init
            else:
                u = _mgite(u, cur_f, lvl["A"][i], lvl["S"][i])
        out_list[l] = (u, cur_f)

    # ---- upward sweep: u_post = LayerNorm(u_j + RT_j(u_{j+1})), post-smooth
    for j in range(L - 2, -1, -1):
        u_j, f_j = out_list[j]
        u_next = out_list[j + 1][0]
        k_rt = 3 if (j == 0 or j == L - 2) else 4
        gamma = params["ln_gamma"] if j == 0 else None
        beta = params["ln_beta"] if j == 0 else None
        u_cur = conv_transpose_s2(u_next, params["RT"][j], k=k_rt,
                                  residual=u_j, ln=True,
                                  gamma=gamma, beta=beta)
        for i in range(num_iteration[j][1]):                # Identity if 0
            u_cur = _mgite(u_cur, f_j, levels[j]["A_post"][i],
                           levels[j]["S_post"][i])
        out_list[j] = (u_cur, f_j)

    return out_list[0][0]


# ---------------------------------------------------------------------------
# Deterministic synthetic parameters (shapes follow MgConv_helm2.__init__)
# ---------------------------------------------------------------------------
def init_params(key, num_iteration, cu, cf, h0):
    L = len(num_iteration)
    keys = iter(jax.random.split(key, 512))

    def w(shape, fan_in):
        return jax.random.normal(next(keys), shape, jnp.float32) * (
            0.5 / math.sqrt(fan_in))

    p = {"levels": [], "RT": []}
    for l in range(L):
        cu_l, cf_l = cu * (l + 1), cf * (l + 1)
        lvl = {"S": [], "A": [], "S_post": [], "A_post": []}
        if l > 0:
            cu_p, cf_p = cu * l, cf * l
            lvl["Pi"] = w((cu_l, 9 * cu_p), 9 * cu_p)   # 3x3 stride-2, no bias
            lvl["R"] = w((cf_l, 9 * cf_p), 9 * cf_p)
        for i in range(num_iteration[l][0]):
            lvl["S"].append(w((cu_l, 9 * cf_l), 9 * cf_l))
            lvl["A"].append(None if (l == 0 and i == 0)
                            else w((cf_l, 9 * cu_l), 9 * cu_l))
        for i in range(num_iteration[l][1]):
            lvl["S_post"].append(w((cu_l, 9 * cf_l), 9 * cf_l))
            lvl["A_post"].append(w((cf_l, 9 * cu_l), 9 * cu_l))
        p["levels"].append(lvl)
    for j in range(L - 1):                                  # RTlayers
        k = 3 if (j == 0 or j == L - 2) else 4
        cin, cout = cu * (j + 2), cu * (j + 1)
        p["RT"].append(w((cout, k * k * cin), k * k * cin))
    # level-0 LayerNorm affine params (PyTorch default init: ones / zeros)
    p["ln_gamma"] = jnp.ones((cu, h0, h0), jnp.float32)
    p["ln_beta"] = jnp.zeros((cu, h0, h0), jnp.float32)
    return p


# ---------------------------------------------------------------------------
# Tiny self-check of the fused kernel epilogues against plain JAX
# ---------------------------------------------------------------------------
def _self_check():
    k = jax.random.PRNGKey(1)
    k1, k2, k3, k4, k5 = jax.random.split(k, 5)
    N, Cout, K, M = 2, 3, 18, 77
    w2 = jax.random.normal(k1, (Cout, K), jnp.float32) * 0.2
    pt = jax.random.normal(k2, (N, K, M), jnp.float32).astype(jnp.bfloat16)
    r = jax.random.normal(k3, (N, Cout, M), jnp.float32)
    g = jax.random.normal(k4, (Cout, M), jnp.float32)
    b = jax.random.normal(k5, (Cout, M), jnp.float32)

    dot = jnp.einsum("ok,nkm->nom",
                     w2.astype(jnp.bfloat16).astype(jnp.float32),
                     pt.astype(jnp.float32))
    # residual / sign epilogue
    got = _conv_matmul(w2, pt, residual=r, sign=-1.0)
    assert jnp.allclose(got, r - dot, atol=1e-2, rtol=1e-2)
    # LayerNorm (+affine) epilogue
    got = _conv_matmul(w2, pt, residual=r, sign=1.0, ln=True, gamma=g, beta=b)
    pre = r + dot
    mu = pre.mean(axis=(1, 2), keepdims=True)
    var = ((pre - mu) ** 2).mean(axis=(1, 2), keepdims=True)
    want = (pre - mu) * jax.lax.rsqrt(var + _LN_EPS) * g + b
    assert jnp.allclose(got, want, atol=1e-2, rtol=1e-2)


# ---------------------------------------------------------------------------
if __name__ == "__main__":
    _self_check()

    # The module hard-codes LayerNorm sizes [*,101,101], [*,50,50], [*,24,24],
    # [*,11,11], so the spatial size must be 101 and len(num_iteration) = 5
    # (multigrid levels 101 -> 50 -> 24 -> 11 -> 5).
    N = 2
    CU, CF = 4, 4                       # num_channel_u, num_channel_f
    H = W = 101
    NUM_ITERATION = [[1, 1], [1, 1], [1, 1], [1, 1], [1, 0]]

    key = jax.random.PRNGKey(0)
    pkey, xkey = jax.random.split(key)
    params = init_params(pkey, NUM_ITERATION, CU, CF, H)
    x = jax.random.normal(xkey, (N, CF, H, W), jnp.float32)   # NCHW input f

    fwd = jax.jit(functools.partial(mgconv_helm2_forward,
                                    num_iteration=NUM_ITERATION))
    out = fwd(params, x)
    jax.block_until_ready(out)
    assert out.shape == (N, CU, H, W), out.shape
    assert bool(jnp.all(jnp.isfinite(out)))
    print("KERNEL_OK")
</pallas_src>

<mosaic_0001>
module attributes {stable_mosaic.version = 11 : i64} {
  func.func @kernel(%arg0: i32, %arg1: memref<3x18xbf16, #tpu.memory_space<vmem>>, %arg2: memref<1x18x77xbf16, #tpu.memory_space<vmem>>, %arg3: memref<1x3x77xf32, #tpu.memory_space<vmem>>, %arg4: memref<1x3x77xf32, #tpu.memory_space<vmem>>) attributes {dimension_semantics = [#tpu.dimension_semantics<parallel>], iteration_bounds = array<i64: 2>, scalar_prefetch = 0 : i64, scratch_operands = 0 : i64, tpu.core_type = #tpu.core_type<tc>, window_params = [{pipeline_mode = #tpu.pipeline_mode<synchronous>, transform_indices = @transform_0, window_bounds = array<i64: 3, 18>}, {transform_indices = @transform_1, window_bounds = array<i64: 1, 18, 77>}, {transform_indices = @transform_2, window_bounds = array<i64: 1, 3, 77>}, {transform_indices = @transform_3, window_bounds = array<i64: 1, 3, 77>}]} {
    %c0 = arith.constant 0 : index
    %c0_0 = arith.constant 0 : index
    %0 = vector.load %arg1[%c0, %c0_0] : memref<3x18xbf16, #tpu.memory_space<vmem>>, vector<3x18xbf16>
    %c0_1 = arith.constant 0 : index
    %c0_2 = arith.constant 0 : index
    %c0_3 = arith.constant 0 : index
    %1 = vector.load %arg2[%c0_1, %c0_2, %c0_3] : memref<1x18x77xbf16, #tpu.memory_space<vmem>>, vector<1x18x77xbf16>
    %2 = vector.shape_cast %1 : vector<1x18x77xbf16> to vector<18x77xbf16>
    %cst = arith.constant dense<0.000000e+00> : vector<3x77xf32>
    %3 = tpu.matmul %0, %2, %cst {dimension_numbers = #tpu.dot_dimension_numbers<[1], [0], [0], [1], [0, 0, 1, 1], [], []>} : vector<3x18xbf16>, vector<18x77xbf16>, vector<3x77xf32> -> vector<3x77xf32>
    %c0_4 = arith.constant 0 : index
    %c0_5 = arith.constant 0 : index
    %c0_6 = arith.constant 0 : index
    %4 = vector.load %arg3[%c0_4, %c0_5, %c0_6] : memref<1x3x77xf32, #tpu.memory_space<vmem>>, vector<1x3x77xf32>
    %5 = vector.shape_cast %4 : vector<1x3x77xf32> to vector<3x77xf32>
    %6 = arith.subf %5, %3 : vector<3x77xf32>
    %c0_7 = arith.constant 0 : index
    %c0_8 = arith.constant 0 : index
    %c0_9 = arith.constant 0 : index
    %7 = vector.load %arg4[%c0_7, %c0_8, %c0_9] : memref<1x3x77xf32, #tpu.memory_space<vmem>>, vector<1x3x77xf32>
    %8 = vector.shape_cast %7 : vector<1x3x77xf32> to vector<3x77xf32>
    %9 = vector.shape_cast %6 : vector<3x77xf32> to vector<1x3x77xf32>
    tpu.vector_store %arg4[%c0_7, %c0_8, %c0_9], %9 {strides = array<i32>} : memref<1x3x77xf32, #tpu.memory_space<vmem>>, vector<1x3x77xf32>,
    return
  }
  func.func @transform_0(%arg0: i32) -> (i32, i32) {
    %c0_i32 = arith.constant 0 : i32
    %c0_i32_0 = arith.constant 0 : i32
    %c0_i32_1 = arith.constant 0 : i32
    return %c0_i32, %c0_i32_0 : i32, i32
  }
  func.func @transform_1(%arg0: i32) -> (i32, i32, i32) {
    %c0_i32 = arith.constant 0 : i32
    %c0_i32_0 = arith.constant 0 : i32
    %c0_i32_1 = arith.constant 0 : i32
    return %arg0, %c0_i32, %c0_i32_0 : i32, i32, i32
  }
  func.func @transform_2(%arg0: i32) -> (i32, i32, i32) {
    %c0_i32 = arith.constant 0 : i32
    %c0_i32_0 = arith.constant 0 : i32
    %c0_i32_1 = arith.constant 0 : i32
    return %arg0, %c0_i32, %c0_i32_0 : i32, i32, i32
  }
  func.func @transform_3(%arg0: i32) -> (i32, i32, i32) {
    %c0_i32 = arith.constant 0 : i32
    %c0_i32_0 = arith.constant 0 : i32
    %c0_i32_1 = arith.constant 0 : i32
    return %arg0, %c0_i32, %c0_i32_0 : i32, i32, i32
  }
}

</mosaic_0001>

<llo_original>
// kernel: tpu_custom_call.1
$region0: #{tpu_custom_call.1}
  #allocation0 [shape = 'u32[]', space=smem, size = 0x4, offset = 0x4, fixed_abs, tag = 'smem constant byte address 0x4 - core index']
  #allocation1 [shape = 'u32[144,128]{1,0:T(1,128)}', space=vmem, size = 0x12000, scoped, tag = 'internal scratch']
  %s0 = inlined_call_operand.vmem [shape: bf16[3,18], index: 0, kind: input, shape index: {}]
  %s1 = inlined_call_operand.vmem [shape: bf16[2,18,77], index: 1, kind: input, shape index: {}]
  %s2 = inlined_call_operand.vmem [shape: f32[2,3,77], index: 2, kind: input, shape index: {}]
  %s3 = inlined_call_operand.vmem [shape: f32[2,3,77], index: 3, kind: output, shape index: {}]
  %s4 = sld [smem:[#allocation0]]
  $region45: #{tpu_custom_call.1} parent=0
    _
  %s6 = ssub.s32 1, %s4
  %s7 = scalar_select 0, %s6, %s4
  loop: start=0, step=1, limit=4
  $region2: #{tpu_custom_call.1} parent=0 // loop_pre_header
    _
  $region3: #{tpu_custom_call.1} parent=0 // loop_header
    %s9 = sphi 0, %s13
    %p10 = scmp.ge.s32.totalorder %s9, 4
    %s17 = sphi 0, %s17
    %s19 = sphi 0, %s17
    %s20 = sphi 0, %s19
    %s34 = sphi 0, %s20
    %s40 = sphi 0, %s42
    %s43 = sphi 0, %s40
    %s44 = sphi 0, %s43
    %s60 = sphi 0, %s44
    %s66 = sphi 0, %s68
    %s69 = sphi 0, %s66
    %s70 = sphi 0, %s69
    %s86 = sphi 0, %s70
    %s92 = sphi 0, %s94
    %s95 = sphi 0, %s92
    %s96 = sphi 0, %s95
    %s112 = sphi 0, %s96
  $region4: #{tpu_custom_call.1} parent=0 // loop_header_branch
    %12 = sbr.rel (%p10) target = $region8
  $region5: #{tpu_custom_call.1} parent=0 // loop_body
    %s14 = ssub.s32 %s9, 1
    %s15 = ssub.s32 %s9, 2
    %s16 = sadd.s32 %s9, 1
    %s18 = sadd.s32 %s17, 1
    %p21 = scmp.eq.s32.totalorder %s9, 1
    %p22 = scmp.ne.s32.totalorder %s17, %s19
    %p23 = scmp.eq.s32.totalorder %s9, 0
    %p24 = por %p22, %p23
    %p25 = scmp.ne.s32.totalorder %s17, %s19
    %p26 = scmp.eq.s32.totalorder %s14, 1
    %p27 = por %p25, %p26
    %p28 = scmp.ne.s32.totalorder %s19, %s20
    %p29 = scmp.eq.s32.totalorder %s14, 0
    %p30 = por %p28, %p29
    %p31 = scmp.ne.s32.totalorder %s19, %s20
    %p32 = scmp.eq.s32.totalorder %s15, 1
    %p33 = por %p31, %p32
    %p35 = scmp.ne.s32.totalorder %s20, %s34
    %p36 = scmp.eq.s32.totalorder %s15, 0
    %p37 = por %p35, %p36
    %s38 = ssub.s32 %s9, %s16
    %p39 = scmp.eq.s32.totalorder %s38, 0
    %s41 = sadd.s32 %s40, 1
    %s42 = scalar_select %p39, %s40, %s41
    %p45 = pneg %p39
    %p46 = scmp.eq.s32.totalorder %s9, 1
    %p47 = por %p45, %p46
    %p48 = scmp.ne.s32.totalorder %s40, %s43
    %p49 = scmp.eq.s32.totalorder %s9, 0
    %p50 = por %p48, %p49
    %p51 = scmp.ne.s32.totalorder %s40, %s43
    %p52 = scmp.eq.s32.totalorder %s14, 1
    %p53 = por %p51, %p52
    %p54 = scmp.ne.s32.totalorder %s43, %s44
    %p55 = scmp.eq.s32.totalorder %s14, 0
    %p56 = por %p54, %p55
    %p57 = scmp.ne.s32.totalorder %s43, %s44
    %p58 = scmp.eq.s32.totalorder %s15, 1
    %p59 = por %p57, %p58
    %p61 = scmp.ne.s32.totalorder %s44, %s60
    %p62 = scmp.eq.s32.totalorder %s15, 0
    %p63 = por %p61, %p62
    %s64 = ssub.s32 %s9, %s16
    %p65 = scmp.eq.s32.totalorder %s64, 0
    %s67 = sadd.s32 %s66, 1
    %s68 = scalar_select %p65, %s66, %s67
    %p71 = pneg %p65
    %p72 = scmp.eq.s32.totalorder %s9, 1
    %p73 = por %p71, %p72
    %p74 = scmp.ne.s32.totalorder %s66, %s69
    %p75 = scmp.eq.s32.totalorder %s9, 0
    %p76 = por %p74, %p75
    %p77 = scmp.ne.s32.totalorder %s66, %s69
    %p78 = scmp.eq.s32.totalorder %s14, 1
    %p79 = por %p77, %p78
    %p80 = scmp.ne.s32.totalorder %s69, %s70
    %p81 = scmp.eq.s32.totalorder %s14, 0
    %p82 = por %p80, %p81
    %p83 = scmp.ne.s32.totalorder %s69, %s70
    %p84 = scmp.eq.s32.totalorder %s15, 1
    %p85 = por %p83, %p84
    %p87 = scmp.ne.s32.totalorder %s70, %s86
    %p88 = scmp.eq.s32.totalorder %s15, 0
    %p89 = por %p87, %p88
    %s90 = ssub.s32 %s9, %s16
    %p91 = scmp.eq.s32.totalorder %s90, 0
    %s93 = sadd.s32 %s92, 1
    %s94 = scalar_select %p91, %s92, %s93
    %p97 = pneg %p91
    %p98 = scmp.eq.s32.totalorder %s9, 1
    %p99 = por %p97, %p98
    %p100 = scmp.ne.s32.totalorder %s92, %s95
    %p101 = scmp.eq.s32.totalorder %s9, 0
    %p102 = por %p100, %p101
    %p103 = scmp.ne.s32.totalorder %s92, %s95
    %p104 = scmp.eq.s32.totalorder %s14, 1
    %p105 = por %p103, %p104
    %p106 = scmp.ne.s32.totalorder %s95, %s96
    %p107 = scmp.eq.s32.totalorder %s14, 0
    %p108 = por %p106, %p107
    %p109 = scmp.ne.s32.totalorder %s95, %s96
    %p110 = scmp.eq.s32.totalorder %s15, 1
    %p111 = por %p109, %p110
    %p113 = scmp.ne.s32.totalorder %s96, %s112
    %p114 = scmp.eq.s32.totalorder %s15, 0
    %p115 = por %p113, %p114
    %p116 = scmp.le.s32.totalorder 1, %s9
    %p117 = scmp.lt.s32.totalorder %s9, 3
    %p118 = pnand %p116, %p117
    %p119 = pneg %p118
    // Predicated region
    $region9: #{tpu_custom_call.1} parent=5 // pred_check
      _
    $region10: #{tpu_custom_call.1} parent=5 // pred_check_branch
      %121 = sbr.rel (%p118) target = $region12
    $region11: #{tpu_custom_call.1} parent=5 // pred_region
      %s122 = ssub.s32 %s9, 1
      // Predicated region
      $region13: #{tpu_custom_call.1} parent=11 // pred_check
        %p123 = pneg %p30
      $region14: #{tpu_custom_call.1} parent=11 // pred_check_branch
        %125 = sbr.rel (%p123) target = $region16
      $region15: #{tpu_custom_call.1} parent=11 // pred_region
        _
      $region16: #{tpu_custom_call.1} parent=11 // pred_fallthru
        _
    $region12: #{tpu_custom_call.1} parent=5 // pred_fallthru
      _
    %p126 = scmp.lt.s32.totalorder %s9, 2
    // Predicated region
    $region17: #{tpu_custom_call.1} parent=5 // pred_check
      %p127 = pneg %p126
    $region18: #{tpu_custom_call.1} parent=5 // pred_check_branch
      %129 = sbr.rel (%p127) target = $region20
    $region19: #{tpu_custom_call.1} parent=5 // pred_region
      // Predicated region
      $region21: #{tpu_custom_call.1} parent=19 // pred_check
        %p130 = pneg %p50
      $region22: #{tpu_custom_call.1} parent=19 // pred_check_branch
        %132 = sbr.rel (%p130) target = $region24
      $region23: #{tpu_custom_call.1} parent=19 // pred_region
        %p133 = scmp.lt.s32.totalorder %s9, 1
        %s134 = scalar_select %p133, %s9, 1
        %s135 = smul.addr %s134, 3
        %s136 = smul.addr %s135, 4
        %s137 = scalar_lea.vmem %s1, %s136
      $region24: #{tpu_custom_call.1} parent=19 // pred_fallthru
        _
      // Predicated region
      $region25: #{tpu_custom_call.1} parent=19 // pred_check
        %p138 = pneg %p76
      $region26: #{tpu_custom_call.1} parent=19 // pred_check_branch
        %140 = sbr.rel (%p138) target = $region28
      $region27: #{tpu_custom_call.1} parent=19 // pred_region
        %p141 = scmp.lt.s32.totalorder %s9, 1
        %s142 = scalar_select %p141, %s9, 1
        %s143 = smul.addr %s142, 4
        %s144 = scalar_lea.vmem %s2, %s143
      $region28: #{tpu_custom_call.1} parent=19 // pred_fallthru
        _
    $region20: #{tpu_custom_call.1} parent=5 // pred_fallthru
      _
    %p145 = scmp.le.s32.totalorder 1, %s9
    %p146 = scmp.lt.s32.totalorder %s9, 3
    %p147 = pnand %p145, %p146
    %p148 = pneg %p147
    // Predicated region
    $region29: #{tpu_custom_call.1} parent=5 // pred_check
      _
    $region30: #{tpu_custom_call.1} parent=5 // pred_check_branch
      %150 = sbr.rel (%p147) target = $region32
    $region31: #{tpu_custom_call.1} parent=5 // pred_region
      %s151 = ssub.s32 %s9, 1
      %p152 = pneg %p30
      %p153 = pneg %p27
      %p154 = scmp.lt.s32.totalorder %s14, 1
      %s155 = scalar_select %p154, %s14, 1
      %s156 = smul.addr %s155, 3
      %s157 = smul.addr %s156, 4
      %s158 = scalar_lea.vmem %s1, %s157
      %p159 = pneg %p56
      %p160 = pneg %p53
      %p161 = scmp.lt.s32.totalorder %s14, 1
      %s162 = scalar_select %p161, %s14, 1
      %s163 = smul.addr %s162, 4
      %s164 = scalar_lea.vmem %s2, %s163
      %p165 = pneg %p82
      %p166 = pneg %p79
      %p167 = pneg %p108
      %p168 = pneg %p105
      %p169 = scmp.lt.s32.totalorder %s14, 1
      %s170 = scalar_select %p169, %s14, 1
      %s171 = smul.addr %s170, 4
      %s172 = scalar_lea.vmem %s3, %s171
      %p173 = scmp.lt.s32.totalorder %s14, 1
      %s174 = scalar_select %p173, %s14, 1
      %s175 = smul.addr %s174, 3
      %s176 = smul.addr %s175, 4
      %s177 = scalar_lea.vmem %s1, %s176
      %p178 = scmp.lt.s32.totalorder %s14, 1
      %s179 = scalar_select %p178, %s14, 1
      %s180 = smul.addr %s179, 4
      %s181 = scalar_lea.vmem %s2, %s180
      %p182 = scmp.lt.s32.totalorder %s14, 1
      %s183 = scalar_select %p182, %s14, 1
      %s184 = smul.addr %s183, 4
      %s185 = scalar_lea.vmem %s3, %s184
      %v187 = vld [vmem:[%s0] sm:$0x3]
      %v188 = vld [vmem:[%s177] sm:$0xf]
      %v189 = vld [vmem:[%s177 + $0x4] sm:$0xf]
      %v190 = vld [vmem:[%s177 + $0x8] sm:$0x1]
      %v194 = vunpack.c.l.b16 %v188
      %v195 = vunpack.c.l.b16 %v189
      %v196 = vunpack.c.l.b16 %v190
      %v197 = vpack.c.b16 %v195, %v194
      %v198 = vpack.c.b16 %v196, %v196
      %vm200 = vcmask 146432
      %v202 = vsel %vm200, %v187, 0
      %vm204 = vcmask 1040384
      %v206 = vsel %vm204, %v198, 0
      %208 = vmatprep.subr.bf16.mxu0 0
      %209 = vmatpush1.bf16.msra.mxu0 %v197
      %210 = vmatprep.subr.bf16.mxu0 0
      %211 = vmatpush1.bf16.msra.mxu0 %v206
      %212 = vmatprep.subr.bf16.mxu0 0
      %213 = vmatpush1.bf16.msra.mxu0 0
      %214 = vmatprep.subr.bf16.mxu0 0
      %215 = vmatpush1.bf16.msra.mxu0 0
      %216 = vmatprep.subr.bf16.mxu0 0
      %217 = vmatpush1.bf16.msra.mxu0 0
      %218 = vmatprep.subr.bf16.mxu0 0
      %219 = vmatpush1.bf16.msra.mxu0 0
      %220 = vmatprep.subr.bf16.mxu0 0
      %221 = vmatpush1.bf16.msra.mxu0 0
      %222 = vmatprep.subr.bf16.mxu0 0
      %223 = vmatpush1.bf16.msra.mxu0 0
      %224 = vmatprep.subr.bf16.mxu0 0
      %225 = vmatpush1.bf16.msra.mxu0 0
      %226 = vmatprep.subr.bf16.mxu0 0
      %227 = vmatpush1.bf16.msra.mxu0 0
      %228 = vmatprep.subr.bf16.mxu0 0
      %229 = vmatpush1.bf16.msra.mxu0 0
      %230 = vmatprep.subr.bf16.mxu0 0
      %231 = vmatpush1.bf16.msra.mxu0 0
      %232 = vmatprep.subr.bf16.mxu0 0
      %233 = vmatpush1.bf16.msra.mxu0 0
      %234 = vmatprep.subr.bf16.mxu0 0
      %235 = vmatpush1.bf16.msra.mxu0 0
      %236 = vmatprep.subr.bf16.mxu0 0
      %237 = vmatpush1.bf16.msra.mxu0 0
      %238 = vmatprep.subr.bf16.mxu0 0
      %239 = vmatpush1.bf16.msra.mxu0 0
      %240 = vmatprep.mubr.bf16.mxu0 0
      %241 = vmatmul.mubr.bf16.gmra.mrb[0].mxu0 %v202
      %v242 = vpop.f32.mrb[0].mxu0
      %v243 = vadd.f32 0.0, %v242
      %v244 = vpop.f32.mrb[0].mxu0
      %v245 = vpop.f32.mrb[0].mxu0
      %v246 = vpop.f32.mrb[0].mxu0
      %247 = vdwg.mxu0
      %v248 = vld [vmem:[%s181] sm:$0x7]
      %v249 = vsub.f32 %v248, %v243
      %vm250 = vcmask 624640
      %251 = vst.msk [vmem:[%s185] sm:$0x7] %vm250, %v249
      %p252 = scmp.lt.s32.totalorder %s14, 1
      %s253 = scalar_select %p252, %s14, 1
      %s254 = smul.addr %s253, 4
      %s255 = scalar_lea.vmem %s3, %s254
      // Predicated region
      $region33: #{tpu_custom_call.1} parent=31 // pred_check
        %p256 = pneg %p105
      $region34: #{tpu_custom_call.1} parent=31 // pred_check_branch
        %258 = sbr.rel (%p256) target = $region36
      $region35: #{tpu_custom_call.1} parent=31 // pred_region
        _
      $region36: #{tpu_custom_call.1} parent=31 // pred_fallthru
        _
    $region32: #{tpu_custom_call.1} parent=5 // pred_fallthru
      _
    %p259 = scmp.le.s32.totalorder 2, %s9
    // Predicated region
    $region37: #{tpu_custom_call.1} parent=5 // pred_check
      %p260 = pneg %p259
    $region38: #{tpu_custom_call.1} parent=5 // pred_check_branch
      %262 = sbr.rel (%p260) target = $region40
    $region39: #{tpu_custom_call.1} parent=5 // pred_region
      %s263 = ssub.s32 %s9, 2
      // Predicated region
      $region41: #{tpu_custom_call.1} parent=39 // pred_check
        %p264 = pneg %p111
      $region42: #{tpu_custom_call.1} parent=39 // pred_check_branch
        %266 = sbr.rel (%p264) target = $region44
      $region43: #{tpu_custom_call.1} parent=39 // pred_region
        %p267 = scmp.lt.s32.totalorder %s15, 1
        %s268 = scalar_select %p267, %s15, 1
        %s269 = smul.addr %s268, 4
        %s270 = scalar_lea.vmem %s3, %s269
      $region44: #{tpu_custom_call.1} parent=39 // pred_fallthru
        _
    $region40: #{tpu_custom_call.1} parent=5 // pred_fallthru
      _
  $region6: #{tpu_custom_call.1} parent=0 // loop_footer
    %s13 = sadd.s32 1, %s9
  $region7: #{tpu_custom_call.1} parent=0 // loop_footer_branch
    %8 = sbr.rel target = $region3
  $region8: #{tpu_custom_call.1} parent=0 // loop_exit
    _

</llo_original>
